<compile_context>
chip_gen: v7x
topology: tpu7x:2x2x1
jax: 0.10.0
libtpu: 0.0.40
codegen_flags: <defaults>
</compile_context>

<pallas_src>
import functools

import jax
import jax.numpy as jnp
from jax.experimental import pallas as pl
from jax.experimental.pallas import tpu as pltpu

_LANES = 128
# (2048, 128) f32 = 1 MiB per input buffer -> 2 MiB double-buffered; fits
# comfortably inside v5e's 16 MiB / v6e's 32 MiB / v7x's 32 MiB scoped VMEM.
_MAX_TILE_ROWS = 2048


def _inference_kernel(n_elements, x_ref, o_ref, sum_acc, sq_acc):
    """Streaming sum / sum-of-squares reduction + fuzzy rule table.

    n_elements : static Python int, true (unpadded) element count.
    x_ref      : (tile_rows, 128) VMEM tile of the (zero-padded) input.
    o_ref      : (1, 1) SMEM scalar output.
    sum_acc/sq_acc : (1, 128) f32 VMEM lane-vector accumulators.
    """
    i = pl.program_id(0)

    @pl.when(i == 0)
    def _init():
        sum_acc[...] = jnp.zeros_like(sum_acc)
        sq_acc[...] = jnp.zeros_like(sq_acc)

    # Per-tile partial reduction stays on the VPU (sublane reduce + add);
    # accumulation in f32 regardless of input dtype.
    x = x_ref[...].astype(jnp.float32)
    sum_acc[...] += jnp.sum(x, axis=0, keepdims=True)
    sq_acc[...] += jnp.sum(x * x, axis=0, keepdims=True)

    @pl.when(i == pl.num_programs(0) - 1)
    def _finalize():
        # Single cross-lane reduce, once per kernel.
        total_sum = jnp.sum(sum_acc[...])
        total_sq = jnp.sum(sq_acc[...])

        n = jnp.float32(n_elements)
        inv_n = jnp.float32(1.0 / n_elements)
        inv_nm1 = jnp.float32(1.0 / (n_elements - 1))

        mean = total_sum * inv_n
        # Unbiased (ddof=1) variance from sum / sumsq (pads contribute 0).
        var = (total_sq - n * mean * mean) * inv_nm1
        var = jnp.maximum(var, jnp.float32(0.0))
        std = jnp.sqrt(var)

        # Fuzzy rule table (nested scalar selects on the VPU).
        w_low = jnp.where(std <= 0.1, 0.9, jnp.where(std <= 0.3, 0.8, 0.6))
        w_mid = jnp.where(std <= 0.1, 0.6, jnp.where(std <= 0.3, 0.5, 0.4))
        w_high = jnp.where(std <= 0.1, 0.4, jnp.where(std <= 0.3, 0.2, 0.1))
        w = jnp.where(mean <= 0.2, w_low, jnp.where(mean <= 0.5, w_mid, w_high))

        o_ref[0, 0] = w.astype(jnp.float32)


def inference_layer(fuzzy_outputs):
    """Pallas equivalent of InferenceLayer.forward. Returns a scalar f32."""
    flat = jnp.reshape(fuzzy_outputs, (-1,))
    total = flat.shape[0]

    # Lane-dense layout: pad up to a (rows, 128) slab whose row count is a
    # multiple of the tile size (itself a multiple of 8 sublanes).
    rows = pl.cdiv(total, _LANES)
    tile_rows = min(_MAX_TILE_ROWS, ((rows + 7) // 8) * 8)
    padded_rows = pl.cdiv(rows, tile_rows) * tile_rows
    padded_total = padded_rows * _LANES
    if padded_total != total:
        flat = jnp.pad(flat, (0, padded_total - total))
    x2d = jnp.reshape(flat, (padded_rows, _LANES))

    grid = (padded_rows // tile_rows,)
    kernel = functools.partial(_inference_kernel, total)

    out = pl.pallas_call(
        kernel,
        out_shape=jax.ShapeDtypeStruct((1, 1), jnp.float32),
        grid_spec=pltpu.PrefetchScalarGridSpec(
            num_scalar_prefetch=0,
            grid=grid,
            in_specs=[pl.BlockSpec((tile_rows, _LANES), lambda i: (i, 0))],
            out_specs=pl.BlockSpec(memory_space=pltpu.MemorySpace.SMEM),
            scratch_shapes=[
                pltpu.VMEM((1, _LANES), jnp.float32),  # running sum(x)
                pltpu.VMEM((1, _LANES), jnp.float32),  # running sum(x*x)
            ],
        ),
        compiler_params=pltpu.CompilerParams(
            dimension_semantics=("arbitrary",),
            vmem_limit_bytes=32 * 1024 * 1024,
        ),
        cost_estimate=pl.CostEstimate(
            flops=3 * padded_total,
            transcendentals=1,
            bytes_accessed=padded_total * x2d.dtype.itemsize + 4,
        ),
    )(x2d)
    return out[0, 0]


def _reference(x):
    """Pure-JAX reference matching the PyTorch module."""
    mean = jnp.mean(x)
    std = jnp.std(x, ddof=1)
    w_low = jnp.where(std <= 0.1, 0.9, jnp.where(std <= 0.3, 0.8, 0.6))
    w_mid = jnp.where(std <= 0.1, 0.6, jnp.where(std <= 0.3, 0.5, 0.4))
    w_high = jnp.where(std <= 0.1, 0.4, jnp.where(std <= 0.3, 0.2, 0.1))
    return jnp.where(mean <= 0.2, w_low, jnp.where(mean <= 0.5, w_mid, w_high))


if __name__ == "__main__":
    key = jax.random.PRNGKey(0)
    k0, k1, k2 = jax.random.split(key, 3)

    # Primary case: the module's typical NCHW fuzzy-output tensor.
    x = jax.random.uniform(k0, (2, 4, 16, 16), dtype=jnp.float32)
    got = jax.block_until_ready(inference_layer(x))
    ref = _reference(x)
    assert abs(float(got) - float(ref)) < 1e-6, (float(got), float(ref))

    # Padding path: element count not a multiple of 128.
    x_odd = jax.random.uniform(k1, (3, 5, 7), dtype=jnp.float32) * 2.0
    got_odd = jax.block_until_ready(inference_layer(x_odd))
    ref_odd = _reference(x_odd)
    assert abs(float(got_odd) - float(ref_odd)) < 1e-6, (
        float(got_odd), float(ref_odd))

    # Multi-tile path: several grid steps of streaming accumulation.
    x_big = jax.random.normal(k2, (8, 8, 64, 128), dtype=jnp.float32) * 0.05 + 0.1
    got_big = jax.block_until_ready(inference_layer(x_big))
    ref_big = _reference(x_big)
    assert abs(float(got_big) - float(ref_big)) < 1e-6, (
        float(got_big), float(ref_big))

    print("KERNEL_OK")
</pallas_src>

<mosaic_0001>
module attributes {stable_mosaic.version = 11 : i64} {
  func.func @_inference_kernel(%arg0: i32, %arg1: memref<16x128xf32, #tpu.memory_space<vmem>>, %arg2: memref<1x1xf32, #tpu.memory_space<smem>>, %arg3: memref<1x128xf32, #tpu.memory_space<vmem>>, %arg4: memref<1x128xf32, #tpu.memory_space<vmem>>) attributes {dimension_semantics = [#tpu.dimension_semantics<arbitrary>], iteration_bounds = array<i64: 1>, scalar_prefetch = 0 : i64, scratch_operands = 2 : i64, tpu.core_type = #tpu.core_type<tc>, window_params = [{transform_indices = @transform_0, window_bounds = array<i64: 16, 128>}, {transform_indices = @transform_1, window_bounds = array<i64: 1, 1>}]} {
    %c0_i32 = arith.constant 0 : i32
    %0 = arith.cmpi eq, %arg0, %c0_i32 : i32
    %1 = arith.extui %0 : i1 to i32
    %c0_i32_0 = arith.constant 0 : i32
    %2 = arith.cmpi ne, %1, %c0_i32_0 : i32
    scf.if %2 {
      %cst_13 = arith.constant 0.000000e+00 : f32
      %18 = vector.broadcast %cst_13 : f32 to vector<1x128xf32>
      %c0_14 = arith.constant 0 : index
      %c0_15 = arith.constant 0 : index
      %19 = vector.load %arg3[%c0_14, %c0_15] : memref<1x128xf32, #tpu.memory_space<vmem>>, vector<1x128xf32>
      tpu.vector_store %arg3[%c0_14, %c0_15], %18 {strides = array<i32>} : memref<1x128xf32, #tpu.memory_space<vmem>>, vector<1x128xf32>,
      %cst_16 = arith.constant 0.000000e+00 : f32
      %20 = vector.broadcast %cst_16 : f32 to vector<1x128xf32>
      %c0_17 = arith.constant 0 : index
      %c0_18 = arith.constant 0 : index
      %21 = vector.load %arg4[%c0_17, %c0_18] : memref<1x128xf32, #tpu.memory_space<vmem>>, vector<1x128xf32>
      tpu.vector_store %arg4[%c0_17, %c0_18], %20 {strides = array<i32>} : memref<1x128xf32, #tpu.memory_space<vmem>>, vector<1x128xf32>,
    } else {
    }
    %c0 = arith.constant 0 : index
    %c0_1 = arith.constant 0 : index
    %3 = vector.load %arg1[%c0, %c0_1] : memref<16x128xf32, #tpu.memory_space<vmem>>, vector<16x128xf32>
    %c0_2 = arith.constant 0 : index
    %c0_3 = arith.constant 0 : index
    %4 = vector.load %arg3[%c0_2, %c0_3] : memref<1x128xf32, #tpu.memory_space<vmem>>, vector<1x128xf32>
    %cst = arith.constant dense<0.000000e+00> : vector<128xf32>
    %5 = vector.multi_reduction <add>, %3, %cst [0] : vector<16x128xf32> to vector<128xf32>
    %6 = vector.shape_cast %5 : vector<128xf32> to vector<1x128xf32>
    %7 = arith.addf %4, %6 : vector<1x128xf32>
    %c0_4 = arith.constant 0 : index
    %c0_5 = arith.constant 0 : index
    %8 = vector.load %arg3[%c0_4, %c0_5] : memref<1x128xf32, #tpu.memory_space<vmem>>, vector<1x128xf32>
    tpu.vector_store %arg3[%c0_4, %c0_5], %7 {strides = array<i32>} : memref<1x128xf32, #tpu.memory_space<vmem>>, vector<1x128xf32>,
    %c0_6 = arith.constant 0 : index
    %c0_7 = arith.constant 0 : index
    %9 = vector.load %arg4[%c0_6, %c0_7] : memref<1x128xf32, #tpu.memory_space<vmem>>, vector<1x128xf32>
    %10 = arith.mulf %3, %3 : vector<16x128xf32>
    %cst_8 = arith.constant dense<0.000000e+00> : vector<128xf32>
    %11 = vector.multi_reduction <add>, %10, %cst_8 [0] : vector<16x128xf32> to vector<128xf32>
    %12 = vector.shape_cast %11 : vector<128xf32> to vector<1x128xf32>
    %13 = arith.addf %9, %12 : vector<1x128xf32>
    %c0_9 = arith.constant 0 : index
    %c0_10 = arith.constant 0 : index
    %14 = vector.load %arg4[%c0_9, %c0_10] : memref<1x128xf32, #tpu.memory_space<vmem>>, vector<1x128xf32>
    tpu.vector_store %arg4[%c0_9, %c0_10], %13 {strides = array<i32>} : memref<1x128xf32, #tpu.memory_space<vmem>>, vector<1x128xf32>,
    %c0_i32_11 = arith.constant 0 : i32
    %15 = arith.cmpi eq, %arg0, %c0_i32_11 : i32
    %16 = arith.extui %15 : i1 to i32
    %c0_i32_12 = arith.constant 0 : i32
    %17 = arith.cmpi ne, %16, %c0_i32_12 : i32
    scf.if %17 {
      %c0_13 = arith.constant 0 : index
      %c0_14 = arith.constant 0 : index
      %18 = vector.load %arg3[%c0_13, %c0_14] : memref<1x128xf32, #tpu.memory_space<vmem>>, vector<1x128xf32>
      %19 = vector.shape_cast %18 : vector<1x128xf32> to vector<1x1x128xf32>
      %cst_15 = arith.constant dense<0.000000e+00> : vector<1xf32>
      %20 = vector.multi_reduction <add>, %19, %cst_15 [1, 2] : vector<1x1x128xf32> to vector<1xf32>
      %21 = vector.shape_cast %20 : vector<1xf32> to vector<1x1x1xf32>
      %22 = vector.extract %21[0, 0, 0] : f32 from vector<1x1x1xf32>
      %c0_16 = arith.constant 0 : index
      %c0_17 = arith.constant 0 : index
      %23 = vector.load %arg4[%c0_16, %c0_17] : memref<1x128xf32, #tpu.memory_space<vmem>>, vector<1x128xf32>
      %24 = vector.shape_cast %23 : vector<1x128xf32> to vector<1x1x128xf32>
      %cst_18 = arith.constant dense<0.000000e+00> : vector<1xf32>
      %25 = vector.multi_reduction <add>, %24, %cst_18 [1, 2] : vector<1x1x128xf32> to vector<1xf32>
      %26 = vector.shape_cast %25 : vector<1xf32> to vector<1x1x1xf32>
      %27 = vector.extract %26[0, 0, 0] : f32 from vector<1x1x1xf32>
      %cst_19 = arith.constant 4.8828125E-4 : f32
      %28 = arith.mulf %22, %cst_19 : f32
      %cst_20 = arith.constant 2.048000e+03 : f32
      %29 = arith.mulf %cst_20, %28 : f32
      %30 = arith.mulf %29, %28 : f32
      %31 = arith.subf %27, %30 : f32
      %cst_21 = arith.constant 4.88519785E-4 : f32
      %32 = arith.mulf %31, %cst_21 : f32
      %cst_22 = arith.constant 0.000000e+00 : f32
      %33 = arith.maximumf %32, %cst_22 : f32
      %34 = math.sqrt %33 : f32
      %cst_23 = arith.constant 1.000000e-01 : f32
      %35 = arith.cmpf ole, %34, %cst_23 : f32
      %cst_24 = arith.constant 3.000000e-01 : f32
      %36 = arith.cmpf ole, %34, %cst_24 : f32
      %cst_25 = arith.constant 8.000000e-01 : f32
      %cst_26 = arith.constant 6.000000e-01 : f32
      %37 = arith.select %36, %cst_25, %cst_26 : f32
      %cst_27 = arith.constant 0.899999976 : f32
      %38 = arith.select %35, %cst_27, %37 : f32
      %cst_28 = arith.constant 1.000000e-01 : f32
      %39 = arith.cmpf ole, %34, %cst_28 : f32
      %cst_29 = arith.constant 3.000000e-01 : f32
      %40 = arith.cmpf ole, %34, %cst_29 : f32
      %cst_30 = arith.constant 5.000000e-01 : f32
      %cst_31 = arith.constant 4.000000e-01 : f32
      %41 = arith.select %40, %cst_30, %cst_31 : f32
      %cst_32 = arith.constant 6.000000e-01 : f32
      %42 = arith.select %39, %cst_32, %41 : f32
      %cst_33 = arith.constant 1.000000e-01 : f32
      %43 = arith.cmpf ole, %34, %cst_33 : f32
      %cst_34 = arith.constant 3.000000e-01 : f32
      %44 = arith.cmpf ole, %34, %cst_34 : f32
      %cst_35 = arith.constant 2.000000e-01 : f32
      %cst_36 = arith.constant 1.000000e-01 : f32
      %45 = arith.select %44, %cst_35, %cst_36 : f32
      %cst_37 = arith.constant 4.000000e-01 : f32
      %46 = arith.select %43, %cst_37, %45 : f32
      %cst_38 = arith.constant 2.000000e-01 : f32
      %47 = arith.cmpf ole, %28, %cst_38 : f32
      %cst_39 = arith.constant 5.000000e-01 : f32
      %48 = arith.cmpf ole, %28, %cst_39 : f32
      %49 = arith.select %48, %42, %46 : f32
      %50 = arith.select %47, %38, %49 : f32
      %c0_40 = arith.constant 0 : index
      %c0_41 = arith.constant 0 : index
      %51 = memref.load %arg2[%c0_40, %c0_41] : memref<1x1xf32, #tpu.memory_space<smem>>
      memref.store %50, %arg2[%c0_40, %c0_41] : memref<1x1xf32, #tpu.memory_space<smem>>
    } else {
    }
    return
  }
  func.func @transform_0(%arg0: i32) -> (i32, i32) {
    %c0_i32 = arith.constant 0 : i32
    %c0_i32_0 = arith.constant 0 : i32
    return %arg0, %c0_i32 : i32, i32
  }
  func.func @transform_1(%arg0: i32) -> (i32, i32) {
    %c0_i32 = arith.constant 0 : i32
    %c0_i32_0 = arith.constant 0 : i32
    %c0_i32_1 = arith.constant 0 : i32
    return %c0_i32, %c0_i32_0 : i32, i32
  }
}

</mosaic_0001>

<llo_original>
// kernel: tpu_custom_call.1
$region0: #{tpu_custom_call.1}
  #allocation0 [shape = 'u32[]', space=smem, size = 0x4, offset = 0x4, fixed_abs, tag = 'smem constant byte address 0x4 - core index']
  #allocation1 [shape = 'u32[144,128]{1,0:T(1,128)}', space=vmem, size = 0x12000, scoped, tag = 'internal scratch']
  #allocation2 [shape = 'f32[1,128]{1,0:T(1,128)}', space=vmem, size = 0x200, scoped, tag = 'scratch operand']
  #allocation3 [shape = 'f32[1,128]{1,0:T(1,128)}', space=vmem, size = 0x200, scoped, tag = 'scratch operand']
  %s0 = inlined_call_operand.hbm [shape: f32[16,128], index: 0, kind: input, shape index: {}]
  %s1 = inlined_call_operand.hbm [shape: f32[1,1], index: 1, kind: output, shape index: {}]
  %s2 = sld [smem:[#allocation0]]
  $region26: #{tpu_custom_call.1} parent=0
    _
  %s4 = ssub.s32 1, %s2
  %s5 = scalar_select 0, %s4, %s2
  $region1: #{tpu_custom_call.1} parent=0
    #allocation4 [shape = 'u8[8192]{0}', space=vmem, size = 0x2000, scoped, tag = 'input window, operand 0, single buffered']
    #allocation5 [shape = 's32[1]{0}', space=sflag, size = 0x4, scoped, tag = 'scoped memory for tpu_custom_call.1']
    #allocation6 [shape = 's32[1]{0}', space=sflag, size = 0x4, scoped, tag = 'scoped memory for tpu_custom_call.1']
    #allocation7 [shape = 'u8[512]{0}', space=smem, size = 0x200, scoped, tag = 'output window, operand 0, single buffered']
    %6 = vsyncpa [#allocation5], 0
    %7 = vsyncpa [#allocation6], 0
    // Predicated region
    $region2: #{tpu_custom_call.1} parent=1 // pred_check
      _
    $region3: #{tpu_custom_call.1} parent=1 // pred_check_branch
      %9 = sbr.rel (0) target = $region5
    $region4: #{tpu_custom_call.1} parent=1 // pred_region
      %s11 = ssub.s32 256, 256
      %12 = vsyncadd [#allocation5], %s11
      %s13 = sshll.u32 [#allocation4], 4
      %s14 = int_to_ptr.vmem [resolvable:$true] %s13
      %19 = dma.hbm_to_vmem [thread:$0]  %s0, 256, %s14, [#allocation5], 128, 128, 8
    $region5: #{tpu_custom_call.1} parent=1 // pred_fallthru
      _
    // Predicated region
    $region6: #{tpu_custom_call.1} parent=1 // pred_check
      _
    $region7: #{tpu_custom_call.1} parent=1 // pred_check_branch
      %21 = sbr.rel (0) target = $region9
    $region8: #{tpu_custom_call.1} parent=1 // pred_region
      %22 = dma.done [#allocation5], 256
    $region9: #{tpu_custom_call.1} parent=1 // pred_fallthru
      _
    %p23 = scmp.eq.s32.totalorder 0, 0
    // Predicated region
    $region10: #{tpu_custom_call.1} parent=1 // pred_check
      %p24 = pneg %p23
    $region11: #{tpu_custom_call.1} parent=1 // pred_check_branch
      %26 = sbr.rel (%p24) target = $region13
    $region12: #{tpu_custom_call.1} parent=1 // pred_region
      %27 = vst [vmem:[#allocation2] sm:$0x1] 0.0
      %28 = vst [vmem:[#allocation3] sm:$0x1] 0.0
    $region13: #{tpu_custom_call.1} parent=1 // pred_fallthru
      _
    %v29 = vld [vmem:[#allocation4] sm:$0xff]
    %v30 = vld [vmem:[#allocation4 + $0x8] sm:$0xff]
    %v31 = vld [vmem:[#allocation2] sm:$0x1]
    %v32 = vadd.f32 %v29, %v30
    %v33 = vrot.slane %v32, 4
    %v34 = vadd.f32 %v32, %v33
    %v35 = vrot.slane %v34, 2
    %v36 = vadd.f32 %v34, %v35
    %v37 = vrot.slane %v36, 1
    %v38 = vadd.f32 %v36, %v37
    %v39 = vadd.f32 %v31, %v38
    %40 = vst [vmem:[#allocation2] sm:$0x1] %v39
    %v41 = vld [vmem:[#allocation3] sm:$0x1]
    %v42 = vmul.f32 %v29, %v29
    %v43 = vmul.f32 %v30, %v30
    %v44 = vadd.f32 %v42, %v43
    %v45 = vrot.slane %v44, 4
    %v46 = vadd.f32 %v44, %v45
    %v47 = vrot.slane %v46, 2
    %v48 = vadd.f32 %v46, %v47
    %v49 = vrot.slane %v48, 1
    %v50 = vadd.f32 %v48, %v49
    %v51 = vadd.f32 %v41, %v50
    %52 = vst [vmem:[#allocation3] sm:$0x1] %v51
    // Predicated region
    $region14: #{tpu_custom_call.1} parent=1 // pred_check
      %p53 = pneg %p23
    $region15: #{tpu_custom_call.1} parent=1 // pred_check_branch
      %55 = sbr.rel (%p53) target = $region17
    $region16: #{tpu_custom_call.1} parent=1 // pred_region
      %v56 = vld [vmem:[#allocation2] sm:$0x1]
      %vm57 = vcmask 1040384
      %v58 = vsel %vm57, %v56, 0.0
      %59 = vadd.xlane.f32.xlu0 %v58
      %v60 = vpop.xlane.xlu0 %59
      %v61 = vrot.slane %v60, 4
      %v62 = vadd.f32 %v60, %v61
      %v63 = vrot.slane %v62, 2
      %v64 = vadd.f32 %v62, %v63
      %v65 = vrot.slane %v64, 1
      %v66 = vadd.f32 %v64, %v65
      %s67 = vtos %v66
      %v68 = vld [vmem:[#allocation3] sm:$0x1]
      %v69 = vsel %vm57, %v68, 0.0
      %70 = vadd.xlane.f32.xlu0 %v69
      %v71 = vpop.xlane.xlu0 %70
      %v72 = vrot.slane %v71, 4
      %v73 = vadd.f32 %v71, %v72
      %v74 = vrot.slane %v73, 2
      %v75 = vadd.f32 %v73, %v74
      %v76 = vrot.slane %v75, 1
      %v77 = vadd.f32 %v75, %v76
      %s78 = vtos %v77
      %s79 = smul.f32 %s67, 0.00048828125
      %s80 = smul.f32 %s79, 2048.0
      %s81 = smul.f32 %s80, %s79
      %s82 = ssub.f32 %s78, %s81
      %s83 = smul.f32 %s82, 0.0004885198
      %s84 = smax.f32 %s83, 0.0
      %v85 = vstv %s84
      %v86 = vrsqrt.pop %v85
      %v87 = vmul.f32 %v85, %v86
      %vm88 = vcmp.eq.f32.partialorder %v85, inf
      %v89 = vsel %vm88, %v85, %v87
      %vm90 = vcmp.eq.f32.partialorder %v85, 0.0
      %v91 = vand.u32 %v85, 2147483648
      %v92 = vsel %vm90, %v91, %v89
      %s93 = vtos %v92
      %p94 = scmp.le.f32.partialorder %s93, 0.1
      %p95 = scmp.le.f32.partialorder %s93, 0.3
      %s96 = scalar_select %p95, 0.8, 0.6
      %s97 = scalar_select %p94, 0.9, %s96
      %s98 = scalar_select %p95, 0.5, 0.4
      %s99 = scalar_select %p94, 0.6, %s98
      %s100 = scalar_select %p95, 0.2, 0.1
      %s101 = scalar_select %p94, 0.4, %s100
      %p102 = scmp.le.f32.partialorder %s79, 0.2
      %p103 = scmp.le.f32.partialorder %s79, 0.5
      %s104 = scalar_select %p103, %s99, %s101
      %s105 = scalar_select %p102, %s97, %s104
      %s106 = scalar_lea.smem [#allocation7], 0
      %107 = sst [smem:[%s106]] %s105
    $region17: #{tpu_custom_call.1} parent=1 // pred_fallthru
      _
    // Predicated region
    $region18: #{tpu_custom_call.1} parent=1 // pred_check
      _
    $region19: #{tpu_custom_call.1} parent=1 // pred_check_branch
      %109 = sbr.rel (0) target = $region21
    $region20: #{tpu_custom_call.1} parent=1 // pred_region
      %s111 = ssub.s32 16, 16
      %112 = vsyncadd [#allocation6], %s111
      %115 = dma.smem_to_hbm [#allocation7], 16, %s1, [#allocation6]
    $region21: #{tpu_custom_call.1} parent=1 // pred_fallthru
      _
    // Predicated region
    $region22: #{tpu_custom_call.1} parent=1 // pred_check
      _
    $region23: #{tpu_custom_call.1} parent=1 // pred_check_branch
      %117 = sbr.rel (0) target = $region25
    $region24: #{tpu_custom_call.1} parent=1 // pred_region
      %118 = dma.done [#allocation6], 16
    $region25: #{tpu_custom_call.1} parent=1 // pred_fallthru
      _
    %119 = sfence
    %120 = vsyncpa [#allocation5], 1
    %121 = vsyncpa [#allocation6], 1

</llo_original>
